<compile_context>
chip_gen: v7x
topology: tpu7x:2x2x1
jax: 0.10.0
libtpu: 0.0.40
codegen_flags: <defaults>
</compile_context>

<pallas_src>
import jax
import jax.numpy as jnp
from jax.experimental import pallas as pl
from jax.experimental.pallas import tpu as pltpu

EPS = 1e-5
LANE = 128
SUBLANE = 8


def _round_up(x, m):
    return ((x + m - 1) // m) * m


def _batch_pad_multiple(matmul_dtype):
    """Packed vreg tile height for the matmul dtype: f32->8, bf16->16, i8/fp8->32."""
    packing = max(1, 4 // jnp.dtype(matmul_dtype).itemsize)
    return SUBLANE * packing


def _make_fnn_kernel(num_hidden, b_real, b_pad, matmul_dtype, needs_pad):
    """Fused FNN forward kernel.

    Ref order: x, [Wt_i, gamma_i, beta_i] * num_hidden, Wt_out, b_out, out
               (+ x-pad VMEM scratch iff needs_pad).
    Wt_* are (in, out_pad) in `matmul_dtype`; gamma/beta/b_out are (1, out_pad)
    f32 with padded entries zero.
    """
    inv_b = 1.0 / float(b_real)

    def kernel(*refs):
        x_ref = refs[0]
        if needs_pad:
            out_ref = refs[-2]
            xpad_ref = refs[-1]
            params = refs[1:-2]
        else:
            out_ref = refs[-1]
            params = refs[1:-1]

        if needs_pad:
            # Batch zero-pad folded into the kernel: zero the scratch once,
            # sliced-store x into the top rows (no wrapper jnp.pad / HBM trip).
            xpad_ref[...] = jnp.zeros_like(xpad_ref)
            xpad_ref[0:b_real, :] = x_ref[...].astype(jnp.float32)
            h = xpad_ref[...]
            # Padded rows must stay exactly 0 so batch stats remain correct.
            row_mask = (jax.lax.broadcasted_iota(jnp.int32, (b_pad, 1), 0)
                        < b_real).astype(jnp.float32)
        else:
            h = x_ref[...].astype(jnp.float32)

        idx = 0
        for _ in range(num_hidden):
            wt = params[idx][...]          # (in, out_pad), matmul_dtype
            gamma = params[idx + 1][...]   # (1, out_pad) f32, padded with 0
            beta = params[idx + 2][...]    # (1, out_pad) f32, padded with 0
            idx += 3

            # Linear (bias dropped: cancelled exactly by BN mean subtraction).
            y = jnp.dot(h.astype(matmul_dtype), wt,
                        preferred_element_type=jnp.float32)

            # BatchNorm1d (training mode, biased batch stats), shifted one-pass:
            # subtract a per-column pivot (first real batch row) before the
            # sums to avoid E[y^2]-E[y]^2 catastrophic cancellation.
            pivot = y[0:1, :]
            d = y - pivot
            if needs_pad:
                d = d * row_mask           # padded rows contribute exactly 0
            s1 = jnp.sum(d, axis=0, keepdims=True)
            s2 = jnp.sum(d * d, axis=0, keepdims=True)
            mean_d = s1 * inv_b
            var = jnp.maximum(s2 * inv_b - mean_d * mean_d, 0.0)
            mean = pivot + mean_d
            scale = gamma * jax.lax.rsqrt(var + EPS)  # padded cols: gamma=0 -> 0
            shift = beta - mean * scale

            # fused scale/shift + ReLU (Dropout -> identity, see TODO above)
            h = jnp.maximum(y * scale + shift, 0.0)
            if needs_pad:
                h = h * row_mask

        wt_out = params[idx][...]
        b_out = params[idx + 1][...]
        out = jnp.dot(h.astype(matmul_dtype), wt_out,
                      preferred_element_type=jnp.float32) + b_out
        if needs_pad:
            out = out * row_mask           # padded rows exactly 0 in the output
        out_ref[...] = out

    return kernel


def prepare_fnn_params(inpd, hidden_params, out_params,
                       matmul_dtype=jnp.bfloat16):
    """One-time param prep (do NOT do this per forward call):
      - transpose Linear weights to (in, out),
      - zero-pad every OUTPUT feature dim to a multiple of 128 (lane-dense);
        the first layer's contraction dim stays at the real inpd so x needs no
        feature padding,
      - cast matmul operands to `matmul_dtype`,
      - drop hidden-layer biases (dead under train-mode BatchNorm),
      - keep gamma/beta/final-bias in f32, padded with zeros.
    """
    flat = []
    in_d = inpd   # real in-features of the current layer
    in_p = inpd   # layout in-features as fed to the kernel (x is NOT padded)
    hidden_pad = []
    for (W, _b, g, beta) in hidden_params:
        out_d = W.shape[0]
        out_p = _round_up(out_d, LANE)
        hidden_pad.append(out_p)
        Wt = jnp.pad(W.T.astype(jnp.float32),
                     ((0, in_p - in_d), (0, out_p - out_d)))
        flat.append(Wt.astype(matmul_dtype))
        flat.append(jnp.pad(g.astype(jnp.float32), (0, out_p - out_d)).reshape(1, -1))
        flat.append(jnp.pad(beta.astype(jnp.float32), (0, out_p - out_d)).reshape(1, -1))
        in_d, in_p = out_d, out_p

    W_out, b_out = out_params
    outd = W_out.shape[0]
    outd_pad = _round_up(outd, LANE)
    Wt_out = jnp.pad(W_out.T.astype(jnp.float32),
                     ((0, in_p - in_d), (0, outd_pad - outd)))
    flat.append(Wt_out.astype(matmul_dtype))
    flat.append(jnp.pad(b_out.astype(jnp.float32), (0, outd_pad - outd)).reshape(1, -1))

    meta = dict(num_hidden=len(hidden_params), inpd=inpd,
                outd=outd, outd_pad=outd_pad, hidden_pad=hidden_pad,
                matmul_dtype=matmul_dtype)
    return flat, meta


def fnn_forward(x, prepared):
    """Returns the lane-dense, batch-padded output (B_pad, outd_pad); the real
    data is [:B, :meta['outd']] and all padded rows/cols are exactly 0.  Keeping
    the padded layout avoids a masked/strided copy on the hot path."""
    flat, meta = prepared
    B, inpd = x.shape
    assert inpd == meta["inpd"]
    mdt = meta["matmul_dtype"]
    B_pad = _round_up(B, _batch_pad_multiple(mdt))
    needs_pad = B_pad != B

    args = [x] + list(flat)

    # Honest footprint-derived scoped-VMEM budget, capped per generation.
    arg_bytes = sum(int(a.size) * a.dtype.itemsize for a in args)
    out_bytes = B_pad * meta["outd_pad"] * 4
    scratch_bytes = B_pad * inpd * 4 if needs_pad else 0
    max_w = max([inpd, meta["outd_pad"]] + meta["hidden_pad"])
    act_bytes = 6 * B_pad * max_w * 4          # compiler-managed intermediates
    footprint = arg_bytes + out_bytes + scratch_bytes + act_bytes
    try:
        vmem_cap = int(getattr(pltpu.get_tpu_info(), "vmem_capacity_bytes",
                               64 << 20))
    except Exception:
        vmem_cap = 64 << 20                    # conservative: v7x per-TC VMEM
    vmem_limit = int(max(min(footprint + (8 << 20), vmem_cap - (16 << 20)),
                         1 << 20))

    kernel = _make_fnn_kernel(meta["num_hidden"], B, B_pad, mdt, needs_pad)
    vmem_spec = pl.BlockSpec(memory_space=pltpu.MemorySpace.VMEM)
    scratch_shapes = ([pltpu.VMEM((B_pad, inpd), jnp.float32)]
                      if needs_pad else [])

    out_pad = pl.pallas_call(
        kernel,
        out_shape=jax.ShapeDtypeStruct((B_pad, meta["outd_pad"]), jnp.float32),
        in_specs=[vmem_spec] * len(args),
        out_specs=vmem_spec,
        scratch_shapes=scratch_shapes,
        compiler_params=pltpu.CompilerParams(vmem_limit_bytes=vmem_limit),
    )(*args)
    return out_pad


def init_fnn_params(key, inpd, outd, hidden):
    """Deterministic init mimicking PyTorch defaults (uniform +-1/sqrt(fan_in)
    for Linear, gamma=1 / beta=0 for BatchNorm1d). Weights kept in PyTorch
    (out, in) layout here; prepare_fnn_params() converts them once."""
    hidden_params = []
    start_i = inpd
    for h in hidden:
        key, k_w, k_b = jax.random.split(key, 3)
        bound = 1.0 / jnp.sqrt(float(start_i))
        W = jax.random.uniform(k_w, (h, start_i), jnp.float32, -bound, bound)
        b = jax.random.uniform(k_b, (h,), jnp.float32, -bound, bound)
        gamma = jnp.ones((h,), jnp.float32)
        beta = jnp.zeros((h,), jnp.float32)
        hidden_params.append((W, b, gamma, beta))
        start_i = h
    key, k_w, k_b = jax.random.split(key, 3)
    bound = 1.0 / jnp.sqrt(float(start_i))
    W_out = jax.random.uniform(k_w, (outd, start_i), jnp.float32, -bound, bound)
    b_out = jax.random.uniform(k_b, (outd,), jnp.float32, -bound, bound)
    return hidden_params, (W_out, b_out)


def fnn_reference(x, hidden_params, out_params, matmul_dtype=jnp.float32):
    """Pure-JAX reference of the PyTorch forward (keeps the hidden bias and the
    two-pass variance, so it also validates the kernel's algebraic shortcuts)."""
    h = x.astype(jnp.float32)
    for (W, b, g, beta) in hidden_params:
        y = jnp.dot(h.astype(matmul_dtype), W.T.astype(matmul_dtype),
                    preferred_element_type=jnp.float32) + b
        mean = jnp.mean(y, axis=0, keepdims=True)
        var = jnp.mean((y - mean) ** 2, axis=0, keepdims=True)
        y = (y - mean) / jnp.sqrt(var + EPS) * g + beta
        h = jnp.maximum(y, 0.0)
    W_out, b_out = out_params
    return jnp.dot(h.astype(matmul_dtype), W_out.T.astype(matmul_dtype),
                   preferred_element_type=jnp.float32) + b_out


if __name__ == "__main__":
    # Small shapes consistent with FNN(inpd, outd, hidden, dropout_prob)
    B, inpd, outd = 64, 16, 8
    hidden = (32, 32)

    key = jax.random.PRNGKey(0)
    key, kx = jax.random.split(key)
    x = jax.random.normal(kx, (B, inpd), jnp.float32)

    hidden_params, out_params = init_fnn_params(key, inpd, outd, hidden)

    # 1) f32 MXU path, aligned batch: exact-semantics check vs PyTorch-style ref.
    prep_f32 = prepare_fnn_params(inpd, hidden_params, out_params,
                                  matmul_dtype=jnp.float32)
    out_f32 = jax.block_until_ready(fnn_forward(x, prep_f32))
    ref_f32 = fnn_reference(x, hidden_params, out_params, matmul_dtype=jnp.float32)
    assert jnp.allclose(out_f32[:B, :outd], ref_f32, atol=1e-3, rtol=1e-3), \
        "Pallas f32 output mismatch vs reference"

    # 2) bf16-MXU / f32-accumulation path (performance default): compare against
    # a reference that also feeds its matmuls in bf16.
    prep_bf16 = prepare_fnn_params(inpd, hidden_params, out_params,
                                   matmul_dtype=jnp.bfloat16)
    out_bf16 = jax.block_until_ready(fnn_forward(x, prep_bf16))
    ref_bf16 = fnn_reference(x, hidden_params, out_params, matmul_dtype=jnp.bfloat16)
    assert jnp.allclose(out_bf16[:B, :outd], ref_bf16, atol=1e-2, rtol=1e-2), \
        "Pallas bf16 output mismatch vs bf16 reference"

    # 3) unaligned batch: exercises the in-kernel zero-pad scratch + row masking.
    B2 = 37
    x2 = x[:B2]
    out2 = jax.block_until_ready(fnn_forward(x2, prep_f32))
    ref2 = fnn_reference(x2, hidden_params, out_params, matmul_dtype=jnp.float32)
    assert jnp.allclose(out2[:B2, :outd], ref2, atol=1e-3, rtol=1e-3), \
        "Pallas unaligned-batch output mismatch vs reference"
    assert bool(jnp.all(out2[B2:, :] == 0.0)) and bool(jnp.all(out2[:, outd:] == 0.0)), \
        "padded rows/cols of the lane-dense output must be exactly zero"

    print("KERNEL_OK")
</pallas_src>

<mosaic_0001>
module attributes {stable_mosaic.version = 11 : i64} {
  func.func @kernel(%arg0: memref<64x16xf32, #tpu.memory_space<vmem>>, %arg1: memref<16x128xf32, #tpu.memory_space<vmem>>, %arg2: memref<1x128xf32, #tpu.memory_space<vmem>>, %arg3: memref<1x128xf32, #tpu.memory_space<vmem>>, %arg4: memref<128x128xf32, #tpu.memory_space<vmem>>, %arg5: memref<1x128xf32, #tpu.memory_space<vmem>>, %arg6: memref<1x128xf32, #tpu.memory_space<vmem>>, %arg7: memref<128x128xf32, #tpu.memory_space<vmem>>, %arg8: memref<1x128xf32, #tpu.memory_space<vmem>>, %arg9: memref<64x128xf32, #tpu.memory_space<vmem>>) attributes {dimension_semantics = [], scalar_prefetch = 0 : i64, scratch_operands = 0 : i64, tpu.core_type = #tpu.core_type<tc>} {
    %c0 = arith.constant 0 : index
    %c0_0 = arith.constant 0 : index
    %0 = vector.load %arg0[%c0, %c0_0] : memref<64x16xf32, #tpu.memory_space<vmem>>, vector<64x16xf32>
    %c0_1 = arith.constant 0 : index
    %c0_2 = arith.constant 0 : index
    %1 = vector.load %arg1[%c0_1, %c0_2] : memref<16x128xf32, #tpu.memory_space<vmem>>, vector<16x128xf32>
    %c0_3 = arith.constant 0 : index
    %c0_4 = arith.constant 0 : index
    %2 = vector.load %arg2[%c0_3, %c0_4] : memref<1x128xf32, #tpu.memory_space<vmem>>, vector<1x128xf32>
    %c0_5 = arith.constant 0 : index
    %c0_6 = arith.constant 0 : index
    %3 = vector.load %arg3[%c0_5, %c0_6] : memref<1x128xf32, #tpu.memory_space<vmem>>, vector<1x128xf32>
    %cst = arith.constant dense<0.000000e+00> : vector<64x128xf32>
    %4 = tpu.matmul %0, %1, %cst {dimension_numbers = #tpu.dot_dimension_numbers<[1], [0], [0], [1], [0, 0, 1, 1], [], []>} : vector<64x16xf32>, vector<16x128xf32>, vector<64x128xf32> -> vector<64x128xf32>
    %5 = vector.extract_strided_slice %4 {offsets = [0, 0], sizes = [1, 128], strides = [1, 1]} : vector<64x128xf32> to vector<1x128xf32>
    %6 = vector.broadcast %5 : vector<1x128xf32> to vector<64x128xf32>
    %7 = arith.subf %4, %6 : vector<64x128xf32>
    %cst_7 = arith.constant dense<0.000000e+00> : vector<128xf32>
    %8 = vector.multi_reduction <add>, %7, %cst_7 [0] : vector<64x128xf32> to vector<128xf32>
    %9 = vector.shape_cast %8 : vector<128xf32> to vector<1x128xf32>
    %10 = arith.mulf %7, %7 : vector<64x128xf32>
    %cst_8 = arith.constant dense<0.000000e+00> : vector<128xf32>
    %11 = vector.multi_reduction <add>, %10, %cst_8 [0] : vector<64x128xf32> to vector<128xf32>
    %12 = vector.shape_cast %11 : vector<128xf32> to vector<1x128xf32>
    %cst_9 = arith.constant 1.562500e-02 : f32
    %13 = vector.broadcast %cst_9 : f32 to vector<1x128xf32>
    %14 = arith.mulf %9, %13 : vector<1x128xf32>
    %cst_10 = arith.constant 1.562500e-02 : f32
    %15 = vector.broadcast %cst_10 : f32 to vector<1x128xf32>
    %16 = arith.mulf %12, %15 : vector<1x128xf32>
    %17 = arith.mulf %14, %14 : vector<1x128xf32>
    %18 = arith.subf %16, %17 : vector<1x128xf32>
    %cst_11 = arith.constant 0.000000e+00 : f32
    %19 = vector.broadcast %cst_11 : f32 to vector<1x128xf32>
    %20 = arith.maximumf %18, %19 : vector<1x128xf32>
    %21 = arith.addf %5, %14 : vector<1x128xf32>
    %cst_12 = arith.constant 9.99999974E-6 : f32
    %22 = vector.broadcast %cst_12 : f32 to vector<1x128xf32>
    %23 = arith.addf %20, %22 : vector<1x128xf32>
    %24 = math.rsqrt %23 : vector<1x128xf32>
    %25 = arith.mulf %2, %24 : vector<1x128xf32>
    %26 = arith.mulf %21, %25 : vector<1x128xf32>
    %27 = arith.subf %3, %26 : vector<1x128xf32>
    %28 = vector.broadcast %25 : vector<1x128xf32> to vector<64x128xf32>
    %29 = arith.mulf %4, %28 : vector<64x128xf32>
    %30 = vector.broadcast %27 : vector<1x128xf32> to vector<64x128xf32>
    %31 = arith.addf %29, %30 : vector<64x128xf32>
    %cst_13 = arith.constant 0.000000e+00 : f32
    %32 = vector.broadcast %cst_13 : f32 to vector<64x128xf32>
    %33 = arith.maximumf %31, %32 : vector<64x128xf32>
    %c0_14 = arith.constant 0 : index
    %c0_15 = arith.constant 0 : index
    %34 = vector.load %arg4[%c0_14, %c0_15] : memref<128x128xf32, #tpu.memory_space<vmem>>, vector<128x128xf32>
    %c0_16 = arith.constant 0 : index
    %c0_17 = arith.constant 0 : index
    %35 = vector.load %arg5[%c0_16, %c0_17] : memref<1x128xf32, #tpu.memory_space<vmem>>, vector<1x128xf32>
    %c0_18 = arith.constant 0 : index
    %c0_19 = arith.constant 0 : index
    %36 = vector.load %arg6[%c0_18, %c0_19] : memref<1x128xf32, #tpu.memory_space<vmem>>, vector<1x128xf32>
    %cst_20 = arith.constant dense<0.000000e+00> : vector<64x128xf32>
    %37 = tpu.matmul %33, %34, %cst_20 {dimension_numbers = #tpu.dot_dimension_numbers<[1], [0], [0], [1], [0, 0, 1, 1], [], []>} : vector<64x128xf32>, vector<128x128xf32>, vector<64x128xf32> -> vector<64x128xf32>
    %38 = vector.extract_strided_slice %37 {offsets = [0, 0], sizes = [1, 128], strides = [1, 1]} : vector<64x128xf32> to vector<1x128xf32>
    %39 = vector.broadcast %38 : vector<1x128xf32> to vector<64x128xf32>
    %40 = arith.subf %37, %39 : vector<64x128xf32>
    %cst_21 = arith.constant dense<0.000000e+00> : vector<128xf32>
    %41 = vector.multi_reduction <add>, %40, %cst_21 [0] : vector<64x128xf32> to vector<128xf32>
    %42 = vector.shape_cast %41 : vector<128xf32> to vector<1x128xf32>
    %43 = arith.mulf %40, %40 : vector<64x128xf32>
    %cst_22 = arith.constant dense<0.000000e+00> : vector<128xf32>
    %44 = vector.multi_reduction <add>, %43, %cst_22 [0] : vector<64x128xf32> to vector<128xf32>
    %45 = vector.shape_cast %44 : vector<128xf32> to vector<1x128xf32>
    %cst_23 = arith.constant 1.562500e-02 : f32
    %46 = vector.broadcast %cst_23 : f32 to vector<1x128xf32>
    %47 = arith.mulf %42, %46 : vector<1x128xf32>
    %cst_24 = arith.constant 1.562500e-02 : f32
    %48 = vector.broadcast %cst_24 : f32 to vector<1x128xf32>
    %49 = arith.mulf %45, %48 : vector<1x128xf32>
    %50 = arith.mulf %47, %47 : vector<1x128xf32>
    %51 = arith.subf %49, %50 : vector<1x128xf32>
    %cst_25 = arith.constant 0.000000e+00 : f32
    %52 = vector.broadcast %cst_25 : f32 to vector<1x128xf32>
    %53 = arith.maximumf %51, %52 : vector<1x128xf32>
    %54 = arith.addf %38, %47 : vector<1x128xf32>
    %cst_26 = arith.constant 9.99999974E-6 : f32
    %55 = vector.broadcast %cst_26 : f32 to vector<1x128xf32>
    %56 = arith.addf %53, %55 : vector<1x128xf32>
    %57 = math.rsqrt %56 : vector<1x128xf32>
    %58 = arith.mulf %35, %57 : vector<1x128xf32>
    %59 = arith.mulf %54, %58 : vector<1x128xf32>
    %60 = arith.subf %36, %59 : vector<1x128xf32>
    %61 = vector.broadcast %58 : vector<1x128xf32> to vector<64x128xf32>
    %62 = arith.mulf %37, %61 : vector<64x128xf32>
    %63 = vector.broadcast %60 : vector<1x128xf32> to vector<64x128xf32>
    %64 = arith.addf %62, %63 : vector<64x128xf32>
    %cst_27 = arith.constant 0.000000e+00 : f32
    %65 = vector.broadcast %cst_27 : f32 to vector<64x128xf32>
    %66 = arith.maximumf %64, %65 : vector<64x128xf32>
    %c0_28 = arith.constant 0 : index
    %c0_29 = arith.constant 0 : index
    %67 = vector.load %arg7[%c0_28, %c0_29] : memref<128x128xf32, #tpu.memory_space<vmem>>, vector<128x128xf32>
    %c0_30 = arith.constant 0 : index
    %c0_31 = arith.constant 0 : index
    %68 = vector.load %arg8[%c0_30, %c0_31] : memref<1x128xf32, #tpu.memory_space<vmem>>, vector<1x128xf32>
    %cst_32 = arith.constant dense<0.000000e+00> : vector<64x128xf32>
    %69 = tpu.matmul %66, %67, %cst_32 {dimension_numbers = #tpu.dot_dimension_numbers<[1], [0], [0], [1], [0, 0, 1, 1], [], []>} : vector<64x128xf32>, vector<128x128xf32>, vector<64x128xf32> -> vector<64x128xf32>
    %70 = vector.broadcast %68 : vector<1x128xf32> to vector<64x128xf32>
    %71 = arith.addf %69, %70 : vector<64x128xf32>
    %c0_33 = arith.constant 0 : index
    %c0_34 = arith.constant 0 : index
    %72 = vector.load %arg9[%c0_33, %c0_34] : memref<64x128xf32, #tpu.memory_space<vmem>>, vector<64x128xf32>
    tpu.vector_store %arg9[%c0_33, %c0_34], %71 {strides = array<i32>} : memref<64x128xf32, #tpu.memory_space<vmem>>, vector<64x128xf32>,
    return
  }
}

</mosaic_0001>

<llo_original>
// kernel: tpu_custom_call.1
$region0: #{tpu_custom_call.1}
  #allocation0 [shape = 'u32[]', space=smem, size = 0x4, offset = 0x4, fixed_abs, tag = 'smem constant byte address 0x4 - core index']
  #allocation1 [shape = 'u32[144,128]{1,0:T(1,128)}', space=vmem, size = 0x12000, scoped, tag = 'internal scratch']
  %s0 = inlined_call_operand.vmem [shape: f32[64,16], index: 0, kind: input, shape index: {}]
  %s1 = inlined_call_operand.vmem [shape: f32[16,128], index: 1, kind: input, shape index: {}]
  %s2 = inlined_call_operand.vmem [shape: f32[1,128], index: 2, kind: input, shape index: {}]
  %s3 = inlined_call_operand.vmem [shape: f32[1,128], index: 3, kind: input, shape index: {}]
  %s4 = inlined_call_operand.hbm [shape: f32[128,128], index: 4, kind: input, shape index: {}]
  %s5 = inlined_call_operand.vmem [shape: f32[1,128], index: 5, kind: input, shape index: {}]
  %s6 = inlined_call_operand.vmem [shape: f32[1,128], index: 6, kind: input, shape index: {}]
  %s7 = inlined_call_operand.hbm [shape: f32[128,128], index: 7, kind: input, shape index: {}]
  %s8 = inlined_call_operand.vmem [shape: f32[1,128], index: 8, kind: input, shape index: {}]
  %s9 = inlined_call_operand.hbm [shape: f32[64,128], index: 9, kind: output, shape index: {}]
  %s10 = sld [smem:[#allocation0]]
  $region54: #{tpu_custom_call.1} parent=0
    _
  %s12 = ssub.s32 1, %s10
  %s13 = scalar_select 0, %s12, %s10
  $region1: #{tpu_custom_call.1} parent=0
    #allocation2 [shape = 'u8[65536]{0}', space=vmem, size = 0x10000, scoped, tag = 'input window, operand 4, single buffered']
    #allocation3 [shape = 's32[1]{0}', space=sflag, size = 0x4, scoped, tag = 'scoped memory for tpu_custom_call.1']
    #allocation4 [shape = 's32[1]{0}', space=sflag, size = 0x4, scoped, tag = 'scoped memory for tpu_custom_call.1']
    #allocation5 [shape = 'u8[65536]{0}', space=vmem, size = 0x10000, scoped, tag = 'input window, operand 7, single buffered']
    #allocation6 [shape = 's32[1]{0}', space=sflag, size = 0x4, scoped, tag = 'scoped memory for tpu_custom_call.1']
    #allocation7 [shape = 'u8[32768]{0}', space=vmem, size = 0x8000, scoped, tag = 'output window, operand 0, single buffered']
    %14 = vsyncpa [#allocation3], 0
    %15 = vsyncpa [#allocation6], 0
    %16 = vsyncpa [#allocation4], 0
    // Predicated region
    $region2: #{tpu_custom_call.1} parent=1 // pred_check
      _
    $region3: #{tpu_custom_call.1} parent=1 // pred_check_branch
      %18 = sbr.rel (0) target = $region5
    $region4: #{tpu_custom_call.1} parent=1 // pred_region
      _
    $region5: #{tpu_custom_call.1} parent=1 // pred_fallthru
      _
    // Predicated region
    $region6: #{tpu_custom_call.1} parent=1 // pred_check
      _
    $region7: #{tpu_custom_call.1} parent=1 // pred_check_branch
      %20 = sbr.rel (0) target = $region9
    $region8: #{tpu_custom_call.1} parent=1 // pred_region
      _
    $region9: #{tpu_custom_call.1} parent=1 // pred_fallthru
      _
    // Predicated region
    $region10: #{tpu_custom_call.1} parent=1 // pred_check
      _
    $region11: #{tpu_custom_call.1} parent=1 // pred_check_branch
      %22 = sbr.rel (0) target = $region13
    $region12: #{tpu_custom_call.1} parent=1 // pred_region
      _
    $region13: #{tpu_custom_call.1} parent=1 // pred_fallthru
      _
    // Predicated region
    $region14: #{tpu_custom_call.1} parent=1 // pred_check
      _
    $region15: #{tpu_custom_call.1} parent=1 // pred_check_branch
      %24 = sbr.rel (0) target = $region17
    $region16: #{tpu_custom_call.1} parent=1 // pred_region
      _
    $region17: #{tpu_custom_call.1} parent=1 // pred_fallthru
      _
    // Predicated region
    $region18: #{tpu_custom_call.1} parent=1 // pred_check
      _
    $region19: #{tpu_custom_call.1} parent=1 // pred_check_branch
      %26 = sbr.rel (0) target = $region21
    $region20: #{tpu_custom_call.1} parent=1 // pred_region
      %s28 = ssub.s32 2048, 2048
      %29 = vsyncadd [#allocation3], %s28
      %s30 = sshll.u32 [#allocation2], 4
      %s31 = int_to_ptr.vmem [resolvable:$true] %s30
      %36 = dma.hbm_to_vmem [thread:$0]  %s4, 2048, %s31, [#allocation3], 128, 128, 8
    $region21: #{tpu_custom_call.1} parent=1 // pred_fallthru
      _
    // Predicated region
    $region22: #{tpu_custom_call.1} parent=1 // pred_check
      _
    $region23: #{tpu_custom_call.1} parent=1 // pred_check_branch
      %38 = sbr.rel (0) target = $region25
    $region24: #{tpu_custom_call.1} parent=1 // pred_region
      _
    $region25: #{tpu_custom_call.1} parent=1 // pred_fallthru
      _
    // Predicated region
    $region26: #{tpu_custom_call.1} parent=1 // pred_check
      _
    $region27: #{tpu_custom_call.1} parent=1 // pred_check_branch
      %40 = sbr.rel (0) target = $region29
    $region28: #{tpu_custom_call.1} parent=1 // pred_region
      _
    $region29: #{tpu_custom_call.1} parent=1 // pred_fallthru
      _
    // Predicated region
    $region30: #{tpu_custom_call.1} parent=1 // pred_check
      _
    $region31: #{tpu_custom_call.1} parent=1 // pred_check_branch
      %42 = sbr.rel (0) target = $region33
    $region32: #{tpu_custom_call.1} parent=1 // pred_region
      %s44 = ssub.s32 2048, 2048
      %45 = vsyncadd [#allocation6], %s44
      %s46 = sshll.u32 [#allocation5], 4
      %s47 = int_to_ptr.vmem [resolvable:$true] %s46
      %52 = dma.hbm_to_vmem [thread:$0]  %s7, 2048, %s47, [#allocation6], 128, 128, 8
    $region33: #{tpu_custom_call.1} parent=1 // pred_fallthru
      _
    // Predicated region
    $region34: #{tpu_custom_call.1} parent=1 // pred_check
      _
    $region35: #{tpu_custom_call.1} parent=1 // pred_check_branch
      %54 = sbr.rel (0) target = $region37
    $region36: #{tpu_custom_call.1} parent=1 // pred_region
      _
    $region37: #{tpu_custom_call.1} parent=1 // pred_fallthru
      _
    // Predicated region
    $region38: #{tpu_custom_call.1} parent=1 // pred_check
      _
    $region39: #{tpu_custom_call.1} parent=1 // pred_check_branch
      %56 = sbr.rel (0) target = $region41
    $region40: #{tpu_custom_call.1} parent=1 // pred_region
      %57 = dma.done [#allocation3], 2048
    $region41: #{tpu_custom_call.1} parent=1 // pred_fallthru
      _
    // Predicated region
    $region42: #{tpu_custom_call.1} parent=1 // pred_check
      _
    $region43: #{tpu_custom_call.1} parent=1 // pred_check_branch
      %59 = sbr.rel (0) target = $region45
    $region44: #{tpu_custom_call.1} parent=1 // pred_region
      %60 = dma.done [#allocation6], 2048
    $region45: #{tpu_custom_call.1} parent=1 // pred_fallthru
      _
    %v61 = vld [vmem:[%s0] sm:$0xff]
    %v62 = vld [vmem:[%s0 + $0x8] sm:$0xff]
    %v63 = vld [vmem:[%s0 + $0x10] sm:$0xff]
    %v64 = vld [vmem:[%s0 + $0x18] sm:$0xff]
    %v65 = vld [vmem:[%s0 + $0x20] sm:$0xff]
    %v66 = vld [vmem:[%s0 + $0x28] sm:$0xff]
    %v67 = vld [vmem:[%s0 + $0x30] sm:$0xff]
    %v68 = vld [vmem:[%s0 + $0x38] sm:$0xff]
    %v69 = vld [vmem:[%s1] sm:$0xff]
    %v70 = vld [vmem:[%s1 + $0x8] sm:$0xff]
    %v71 = vld [vmem:[%s2] sm:$0x1]
    %v72 = vld [vmem:[%s3] sm:$0x1]
    %vm73 = vcmask 130048
    %v75 = vsel %vm73, %v61, 0
    %v78 = vsel %vm73, %v62, 0
    %v81 = vsel %vm73, %v63, 0
    %v84 = vsel %vm73, %v64, 0
    %v87 = vsel %vm73, %v65, 0
    %v90 = vsel %vm73, %v66, 0
    %v93 = vsel %vm73, %v67, 0
    %v96 = vsel %vm73, %v68, 0
    %98 = vmatprep.subr.mxu0 0.0
    %99 = vmatpush1.msra.mxu0 %v69
    %100 = vmatprep.subr.mxu0 0.0
    %101 = vmatpush1.msra.mxu0 %v70
    %102 = vmatprep.subr.mxu0 0.0
    %103 = vmatpush1.msra.mxu0 0.0
    %104 = vmatprep.subr.mxu0 0.0
    %105 = vmatpush1.msra.mxu0 0.0
    %106 = vmatprep.subr.mxu0 0.0
    %107 = vmatpush1.msra.mxu0 0.0
    %108 = vmatprep.subr.mxu0 0.0
    %109 = vmatpush1.msra.mxu0 0.0
    %110 = vmatprep.subr.mxu0 0.0
    %111 = vmatpush1.msra.mxu0 0.0
    %112 = vmatprep.subr.mxu0 0.0
    %113 = vmatpush1.msra.mxu0 0.0
    %114 = vmatprep.subr.mxu0 0.0
    %115 = vmatpush1.msra.mxu0 0.0
    %116 = vmatprep.subr.mxu0 0.0
    %117 = vmatpush1.msra.mxu0 0.0
    %118 = vmatprep.subr.mxu0 0.0
    %119 = vmatpush1.msra.mxu0 0.0
    %120 = vmatprep.subr.mxu0 0.0
    %121 = vmatpush1.msra.mxu0 0.0
    %122 = vmatprep.subr.mxu0 0.0
    %123 = vmatpush1.msra.mxu0 0.0
    %124 = vmatprep.subr.mxu0 0.0
    %125 = vmatpush1.msra.mxu0 0.0
    %126 = vmatprep.subr.mxu0 0.0
    %127 = vmatpush1.msra.mxu0 0.0
    %128 = vmatprep.subr.mxu0 0.0
    %129 = vmatpush1.msra.mxu0 0.0
    %130 = vmatprep.subr.mxu0 0.0
    %131 = vmatpush1.msra.mxu0 0.0
    %132 = vmatprep.subr.mxu0 0.0
    %133 = vmatpush1.msra.mxu0 0.0
    %134 = vmatprep.subr.mxu0 0.0
    %135 = vmatpush1.msra.mxu0 0.0
    %136 = vmatprep.subr.mxu0 0.0
    %137 = vmatpush1.msra.mxu0 0.0
    %138 = vmatprep.subr.mxu0 0.0
    %139 = vmatpush1.msra.mxu0 0.0
    %140 = vmatprep.subr.mxu0 0.0
    %141 = vmatpush1.msra.mxu0 0.0
    %142 = vmatprep.subr.mxu0 0.0
    %143 = vmatpush1.msra.mxu0 0.0
    %144 = vmatprep.subr.mxu0 0.0
    %145 = vmatpush1.msra.mxu0 0.0
    %146 = vmatprep.subr.mxu0 0.0
    %147 = vmatpush1.msra.mxu0 0.0
    %148 = vmatprep.subr.mxu0 0.0
    %149 = vmatpush1.msra.mxu0 0.0
    %150 = vmatprep.subr.mxu0 0.0
    %151 = vmatpush1.msra.mxu0 0.0
    %152 = vmatprep.subr.mxu0 0.0
    %153 = vmatpush1.msra.mxu0 0.0
    %154 = vmatprep.subr.mxu0 0.0
    %155 = vmatpush1.msra.mxu0 0.0
    %156 = vmatprep.subr.mxu0 0.0
    %157 = vmatpush1.msra.mxu0 0.0
    %158 = vmatprep.subr.mxu0 0.0
    %159 = vmatpush1.msra.mxu0 0.0
    %160 = vmatprep.subr.mxu0 0.0
    %161 = vmatpush1.msra.mxu0 0.0
    %162 = vmatprep.mubr.f32.mxu0 0.0
    %163 = vmatmul.mubr.f32.gmra.mrb[0].mxu0 %v75
    %v164 = vpop.f32.mrb[0].mxu0
    %v165 = vadd.f32 0.0, %v164
    %v166 = vpop.f32.mrb[0].mxu0
    %167 = vmatprep.mubr.f32.mxu0 0.0
    %168 = vmatmul.mubr.f32.gmra.mrb[0].mxu0 %v78
    %v169 = vpop.f32.mrb[0].mxu0
    %v170 = vadd.f32 0.0, %v169
    %v171 = vpop.f32.mrb[0].mxu0
    %172 = vmatprep.mubr.f32.mxu0 0.0
    %173 = vmatmul.mubr.f32.gmra.mrb[0].mxu0 %v81
    %v174 = vpop.f32.mrb[0].mxu0
    %v175 = vadd.f32 0.0, %v174
    %v176 = vpop.f32.mrb[0].mxu0
    %177 = vmatprep.mubr.f32.mxu0 0.0
    %178 = vmatmul.mubr.f32.gmra.mrb[0].mxu0 %v84
    %v179 = vpop.f32.mrb[0].mxu0
    %v180 = vadd.f32 0.0, %v179
    %v181 = vpop.f32.mrb[0].mxu0
    %182 = vmatprep.mubr.f32.mxu0 0.0
    %183 = vmatmul.mubr.f32.gmra.mrb[0].mxu0 %v87
    %v184 = vpop.f32.mrb[0].mxu0
    %v185 = vadd.f32 0.0, %v184
    %v186 = vpop.f32.mrb[0].mxu0
    %187 = vmatprep.mubr.f32.mxu0 0.0
    %188 = vmatmul.mubr.f32.gmra.mrb[0].mxu0 %v90
    %v189 = vpop.f32.mrb[0].mxu0
    %v190 = vadd.f32 0.0, %v189
    %v191 = vpop.f32.mrb[0].mxu0
    %192 = vmatprep.mubr.f32.mxu0 0.0
    %193 = vmatmul.mubr.f32.gmra.mrb[0].mxu0 %v93
    %v194 = vpop.f32.mrb[0].mxu0
    %v195 = vadd.f32 0.0, %v194
    %v196 = vpop.f32.mrb[0].mxu0
    %197 = vmatprep.mubr.f32.mxu0 0.0
    %198 = vmatmul.mubr.f32.gmra.mrb[0].mxu0 %v96
    %v199 = vpop.f32.mrb[0].mxu0
    %v200 = vadd.f32 0.0, %v199
    %v201 = vpop.f32.mrb[0].mxu0
    %202 = vdwg.mxu0
    %v203 = vlaneseq
    %v204 = vshrl.u32 %v203, 7
    %v205 = vsub.s32 0, %v204
    %v206 = vrot.slane %v165, %v205
    %v207 = vsub.f32 %v165, %v206
    %v208 = vsub.f32 %v170, %v206
    %v209 = vsub.f32 %v175, %v206
    %v210 = vsub.f32 %v180, %v206
    %v211 = vsub.f32 %v185, %v206
    %v212 = vsub.f32 %v190, %v206
    %v213 = vsub.f32 %v195, %v206
    %v214 = vsub.f32 %v200, %v206
    %v215 = vadd.f32 %v207, %v208
    %v216 = vadd.f32 %v215, %v209
    %v217 = vadd.f32 %v216, %v210
    %v218 = vadd.f32 %v217, %v211
    %v219 = vadd.f32 %v218, %v212
    %v220 = vadd.f32 %v219, %v213
    %v221 = vadd.f32 %v220, %v214
    %v222 = vrot.slane %v221, 4
    %v223 = vadd.f32 %v221, %v222
    %v224 = vrot.slane %v223, 2
    %v225 = vadd.f32 %v223, %v224
    %v226 = vrot.slane %v225, 1
    %v227 = vadd.f32 %v225, %v226
    %v228 = vmul.f32 %v207, %v207
    %v229 = vmul.f32 %v208, %v208
    %v230 = vmul.f32 %v209, %v209
    %v231 = vmul.f32 %v210, %v210
    %v232 = vmul.f32 %v211, %v211
    %v233 = vmul.f32 %v212, %v212
    %v234 = vmul.f32 %v213, %v213
    %v235 = vmul.f32 %v214, %v214
    %v236 = vadd.f32 %v228, %v229
    %v237 = vadd.f32 %v236, %v230
    %v238 = vadd.f32 %v237, %v231
    %v239 = vadd.f32 %v238, %v232
    %v240 = vadd.f32 %v239, %v233
    %v241 = vadd.f32 %v240, %v234
    %v242 = vadd.f32 %v241, %v235
    %v243 = vrot.slane %v242, 4
    %v244 = vadd.f32 %v242, %v243
    %v245 = vrot.slane %v244, 2
    %v246 = vadd.f32 %v244, %v245
    %v247 = vrot.slane %v246, 1
    %v248 = vadd.f32 %v246, %v247
    %v249 = vmul.f32 %v227, 0.015625
    %v250 = vmul.f32 %v248, 0.015625
    %v251 = vmul.f32 %v249, %v249
    %v252 = vsub.f32 %v250, %v251
    %v253 = vmax.f32 %v252, 0.0
    %v254 = vadd.f32 %v165, %v249
    %v255 = vadd.f32 %v253, 1e-05
    %v256 = vrsqrt.pop %v255
    %v257 = vmul.f32 %v71, %v256
    %v258 = vmul.f32 %v254, %v257
    %v259 = vsub.f32 %v72, %v258
    %v261 = vlaneseq
    %v262 = vshrl.u32 %v261, 7
    %v263 = vsub.s32 0, %v262
    %v264 = vrot.slane %v257, %v263
    %v266 = vmul.f32 %v165, %v264
    %v267 = vmul.f32 %v170, %v264
    %v268 = vmul.f32 %v175, %v264
    %v269 = vmul.f32 %v180, %v264
    %v270 = vmul.f32 %v185, %v264
    %v271 = vmul.f32 %v190, %v264
    %v272 = vmul.f32 %v195, %v264
    %v273 = vmul.f32 %v200, %v264
    %v275 = vlaneseq
    %v276 = vshrl.u32 %v275, 7
    %v277 = vsub.s32 0, %v276
    %v278 = vrot.slane %v259, %v277
    %v280 = vadd.f32 %v266, %v278
    %v281 = vadd.f32 %v267, %v278
    %v282 = vadd.f32 %v268, %v278
    %v283 = vadd.f32 %v269, %v278
    %v284 = vadd.f32 %v270, %v278
    %v285 = vadd.f32 %v271, %v278
    %v286 = vadd.f32 %v272, %v278
    %v287 = vadd.f32 %v273, %v278
    %v288 = vmax.f32 %v280, 0.0
    %v289 = vmax.f32 %v281, 0.0
    %v290 = vmax.f32 %v282, 0.0
    %v291 = vmax.f32 %v283, 0.0
    %v292 = vmax.f32 %v284, 0.0
    %v293 = vmax.f32 %v285, 0.0
    %v294 = vmax.f32 %v286, 0.0
    %v295 = vmax.f32 %v287, 0.0
    %v296 = vld [vmem:[#allocation2] sm:$0xff]
    %v297 = vld [vmem:[#allocation2 + $0x8] sm:$0xff]
    %v298 = vld [vmem:[#allocation2 + $0x10] sm:$0xff]
    %v299 = vld [vmem:[#allocation2 + $0x18] sm:$0xff]
    %v300 = vld [vmem:[#allocation2 + $0x20] sm:$0xff]
    %v301 = vld [vmem:[#allocation2 + $0x28] sm:$0xff]
    %v302 = vld [vmem:[#allocation2 + $0x30] sm:$0xff]
    %v303 = vld [vmem:[#allocation2 + $0x38] sm:$0xff]
    %v304 = vld [vmem:[#allocation2 + $0x40] sm:$0xff]
    %v305 = vld [vmem:[#allocation2 + $0x48] sm:$0xff]
    %v306 = vld [vmem:[#allocation2 + $0x50] sm:$0xff]
    %v307 = vld [vmem:[#allocation2 + $0x58] sm:$0xff]
    %v308 = vld [vmem:[#allocation2 + $0x60] sm:$0xff]
    %v309 = vld [vmem:[#allocation2 + $0x68] sm:$0xff]
    %v310 = vld [vmem:[#allocation2 + $0x70] sm:$0xff]
    %v311 = vld [vmem:[#allocation2 + $0x78] sm:$0xff]
    %v312 = vld [vmem:[%s5] sm:$0x1]
    %v313 = vld [vmem:[%s6] sm:$0x1]
    %314 = vmatprep.subr.mxu0 0.0
    %315 = vmatpush1.msra.mxu0 %v296
    %316 = vmatprep.subr.mxu0 0.0
    %317 = vmatpush1.msra.mxu0 %v297
    %318 = vmatprep.subr.mxu0 0.0
    %319 = vmatpush1.msra.mxu0 %v298
    %320 = vmatprep.subr.mxu0 0.0
    %321 = vmatpush1.msra.mxu0 %v299
    %322 = vmatprep.subr.mxu0 0.0
    %323 = vmatpush1.msra.mxu0 %v300
    %324 = vmatprep.subr.mxu0 0.0
    %325 = vmatpush1.msra.mxu0 %v301
    %326 = vmatprep.subr.mxu0 0.0
    %327 = vmatpush1.msra.mxu0 %v302
    %328 = vmatprep.subr.mxu0 0.0
    %329 = vmatpush1.msra.mxu0 %v303
    %330 = vmatprep.subr.mxu0 0.0
    %331 = vmatpush1.msra.mxu0 %v304
    %332 = vmatprep.subr.mxu0 0.0
    %333 = vmatpush1.msra.mxu0 %v305
    %334 = vmatprep.subr.mxu0 0.0
    %335 = vmatpush1.msra.mxu0 %v306
    %336 = vmatprep.subr.mxu0 0.0
    %337 = vmatpush1.msra.mxu0 %v307
    %338 = vmatprep.subr.mxu0 0.0
    %339 = vmatpush1.msra.mxu0 %v308
    %340 = vmatprep.subr.mxu0 0.0
    %341 = vmatpush1.msra.mxu0 %v309
    %342 = vmatprep.subr.mxu0 0.0
    %343 = vmatpush1.msra.mxu0 %v310
    %344 = vmatprep.subr.mxu0 0.0
    %345 = vmatpush1.msra.mxu0 %v311
    %346 = vmatprep.subr.mxu0 0.0
    %347 = vmatpush1.msra.mxu0 0.0
    %348 = vmatprep.subr.mxu0 0.0
    %349 = vmatpush1.msra.mxu0 0.0
    %350 = vmatprep.subr.mxu0 0.0
    %351 = vmatpush1.msra.mxu0 0.0
    %352 = vmatprep.subr.mxu0 0.0
    %353 = vmatpush1.msra.mxu0 0.0
    %354 = vmatprep.subr.mxu0 0.0
    %355 = vmatpush1.msra.mxu0 0.0
    %356 = vmatprep.subr.mxu0 0.0
    %357 = vmatpush1.msra.mxu0 0.0
    %358 = vmatprep.subr.mxu0 0.0
    %359 = vmatpush1.msra.mxu0 0.0
    %360 = vmatprep.subr.mxu0 0.0
    %361 = vmatpush1.msra.mxu0 0.0
    %362 = vmatprep.subr.mxu0 0.0
    %363 = vmatpush1.msra.mxu0 0.0
    %364 = vmatprep.subr.mxu0 0.0
    %365 = vmatpush1.msra.mxu0 0.0
    %366 = vmatprep.subr.mxu0 0.0
    %367 = vmatpush1.msra.mxu0 0.0
    %368 = vmatprep.subr.mxu0 0.0
    %369 = vmatpush1.msra.mxu0 0.0
    %370 = vmatprep.subr.mxu0 0.0
    %371 = vmatpush1.msra.mxu0 0.0
    %372 = vmatprep.subr.mxu0 0.0
    %373 = vmatpush1.msra.mxu0 0.0
    %374 = vmatprep.subr.mxu0 0.0
    %375 = vmatpush1.msra.mxu0 0.0
    %376 = vmatprep.subr.mxu0 0.0
    %377 = vmatpush1.msra.mxu0 0.0
    %378 = vmatprep.mubr.f32.mxu0 0.0
    %379 = vmatmul.mubr.f32.gmra.mrb[0].mxu0 %v288
    %v380 = vpop.f32.mrb[0].mxu0
    %v381 = vadd.f32 0.0, %v380
    %v382 = vpop.f32.mrb[0].mxu0
    %383 = vmatprep.mubr.f32.mxu0 0.0
    %384 = vmatmul.mubr.f32.gmra.mrb[0].mxu0 %v289
    %v385 = vpop.f32.mrb[0].mxu0
    %v386 = vadd.f32 0.0, %v385
    %v387 = vpop.f32.mrb[0].mxu0
    %388 = vmatprep.mubr.f32.mxu0 0.0
    %389 = vmatmul.mubr.f32.gmra.mrb[0].mxu0 %v290
    %v390 = vpop.f32.mrb[0].mxu0
    %v391 = vadd.f32 0.0, %v390
    %v392 = vpop.f32.mrb[0].mxu0
    %393 = vmatprep.mubr.f32.mxu0 0.0
    %394 = vmatmul.mubr.f32.gmra.mrb[0].mxu0 %v291
    %v395 = vpop.f32.mrb[0].mxu0
    %v396 = vadd.f32 0.0, %v395
    %v397 = vpop.f32.mrb[0].mxu0
    %398 = vmatprep.mubr.f32.mxu0 0.0
    %399 = vmatmul.mubr.f32.gmra.mrb[0].mxu0 %v292
    %v400 = vpop.f32.mrb[0].mxu0
    %v401 = vadd.f32 0.0, %v400
    %v402 = vpop.f32.mrb[0].mxu0
    %403 = vmatprep.mubr.f32.mxu0 0.0
    %404 = vmatmul.mubr.f32.gmra.mrb[0].mxu0 %v293
    %v405 = vpop.f32.mrb[0].mxu0
    %v406 = vadd.f32 0.0, %v405
    %v407 = vpop.f32.mrb[0].mxu0
    %408 = vmatprep.mubr.f32.mxu0 0.0
    %409 = vmatmul.mubr.f32.gmra.mrb[0].mxu0 %v294
    %v410 = vpop.f32.mrb[0].mxu0
    %v411 = vadd.f32 0.0, %v410
    %v412 = vpop.f32.mrb[0].mxu0
    %413 = vmatprep.mubr.f32.mxu0 0.0
    %414 = vmatmul.mubr.f32.gmra.mrb[0].mxu0 %v295
    %v415 = vpop.f32.mrb[0].mxu0
    %v416 = vadd.f32 0.0, %v415
    %v417 = vpop.f32.mrb[0].mxu0
    %418 = vdwg.mxu0
    %v419 = vlaneseq
    %v420 = vshrl.u32 %v419, 7
    %v421 = vsub.s32 0, %v420
    %v422 = vrot.slane %v381, %v421
    %v423 = vsub.f32 %v381, %v422
    %v424 = vsub.f32 %v386, %v422
    %v425 = vsub.f32 %v391, %v422
    %v426 = vsub.f32 %v396, %v422
    %v427 = vsub.f32 %v401, %v422
    %v428 = vsub.f32 %v406, %v422
    %v429 = vsub.f32 %v411, %v422
    %v430 = vsub.f32 %v416, %v422
    %v431 = vadd.f32 %v423, %v424
    %v432 = vadd.f32 %v431, %v425
    %v433 = vadd.f32 %v432, %v426
    %v434 = vadd.f32 %v433, %v427
    %v435 = vadd.f32 %v434, %v428
    %v436 = vadd.f32 %v435, %v429
    %v437 = vadd.f32 %v436, %v430
    %v438 = vrot.slane %v437, 4
    %v439 = vadd.f32 %v437, %v438
    %v440 = vrot.slane %v439, 2
    %v441 = vadd.f32 %v439, %v440
    %v442 = vrot.slane %v441, 1
    %v443 = vadd.f32 %v441, %v442
    %v444 = vmul.f32 %v423, %v423
    %v445 = vmul.f32 %v424, %v424
    %v446 = vmul.f32 %v425, %v425
    %v447 = vmul.f32 %v426, %v426
    %v448 = vmul.f32 %v427, %v427
    %v449 = vmul.f32 %v428, %v428
    %v450 = vmul.f32 %v429, %v429
    %v451 = vmul.f32 %v430, %v430
    %v452 = vadd.f32 %v444, %v445
    %v453 = vadd.f32 %v452, %v446
    %v454 = vadd.f32 %v453, %v447
    %v455 = vadd.f32 %v454, %v448
    %v456 = vadd.f32 %v455, %v449
    %v457 = vadd.f32 %v456, %v450
    %v458 = vadd.f32 %v457, %v451
    %v459 = vrot.slane %v458, 4
    %v460 = vadd.f32 %v458, %v459
    %v461 = vrot.slane %v460, 2
    %v462 = vadd.f32 %v460, %v461
    %v463 = vrot.slane %v462, 1
    %v464 = vadd.f32 %v462, %v463
    %v465 = vmul.f32 %v443, 0.015625
    %v466 = vmul.f32 %v464, 0.015625
    %v467 = vmul.f32 %v465, %v465
    %v468 = vsub.f32 %v466, %v467
    %v469 = vmax.f32 %v468, 0.0
    %v470 = vadd.f32 %v381, %v465
    %v471 = vadd.f32 %v469, 1e-05
    %v472 = vrsqrt.pop %v471
    %v473 = vmul.f32 %v312, %v472
    %v474 = vmul.f32 %v470, %v473
    %v475 = vsub.f32 %v313, %v474
    %v477 = vlaneseq
    %v478 = vshrl.u32 %v477, 7
    %v479 = vsub.s32 0, %v478
    %v480 = vrot.slane %v473, %v479
    %v482 = vmul.f32 %v381, %v480
    %v483 = vmul.f32 %v386, %v480
    %v484 = vmul.f32 %v391, %v480
    %v485 = vmul.f32 %v396, %v480
    %v486 = vmul.f32 %v401, %v480
    %v487 = vmul.f32 %v406, %v480
    %v488 = vmul.f32 %v411, %v480
    %v489 = vmul.f32 %v416, %v480
    %v491 = vlaneseq
    %v492 = vshrl.u32 %v491, 7
    %v493 = vsub.s32 0, %v492
    %v494 = vrot.slane %v475, %v493
    %v496 = vadd.f32 %v482, %v494
    %v497 = vadd.f32 %v483, %v494
    %v498 = vadd.f32 %v484, %v494
    %v499 = vadd.f32 %v485, %v494
    %v500 = vadd.f32 %v486, %v494
    %v501 = vadd.f32 %v487, %v494
    %v502 = vadd.f32 %v488, %v494
    %v503 = vadd.f32 %v489, %v494
    %v504 = vmax.f32 %v496, 0.0
    %v505 = vmax.f32 %v497, 0.0
    %v506 = vmax.f32 %v498, 0.0
    %v507 = vmax.f32 %v499, 0.0
    %v508 = vmax.f32 %v500, 0.0
    %v509 = vmax.f32 %v501, 0.0
    %v510 = vmax.f32 %v502, 0.0
    %v511 = vmax.f32 %v503, 0.0
    %v512 = vld [vmem:[#allocation5] sm:$0xff]
    %v513 = vld [vmem:[#allocation5 + $0x8] sm:$0xff]
    %v514 = vld [vmem:[#allocation5 + $0x10] sm:$0xff]
    %v515 = vld [vmem:[#allocation5 + $0x18] sm:$0xff]
    %v516 = vld [vmem:[#allocation5 + $0x20] sm:$0xff]
    %v517 = vld [vmem:[#allocation5 + $0x28] sm:$0xff]
    %v518 = vld [vmem:[#allocation5 + $0x30] sm:$0xff]
    %v519 = vld [vmem:[#allocation5 + $0x38] sm:$0xff]
    %v520 = vld [vmem:[#allocation5 + $0x40] sm:$0xff]
    %v521 = vld [vmem:[#allocation5 + $0x48] sm:$0xff]
    %v522 = vld [vmem:[#allocation5 + $0x50] sm:$0xff]
    %v523 = vld [vmem:[#allocation5 + $0x58] sm:$0xff]
    %v524 = vld [vmem:[#allocation5 + $0x60] sm:$0xff]
    %v525 = vld [vmem:[#allocation5 + $0x68] sm:$0xff]
    %v526 = vld [vmem:[#allocation5 + $0x70] sm:$0xff]
    %v527 = vld [vmem:[#allocation5 + $0x78] sm:$0xff]
    %v528 = vld [vmem:[%s8] sm:$0x1]
    %v530 = vlaneseq
    %v531 = vshrl.u32 %v530, 7
    %v532 = vsub.s32 0, %v531
    %v533 = vrot.slane %v528, %v532
    %535 = vmatprep.subr.mxu0 0.0
    %536 = vmatpush1.msra.mxu0 %v512
    %537 = vmatprep.subr.mxu0 0.0
    %538 = vmatpush1.msra.mxu0 %v513
    %539 = vmatprep.subr.mxu0 0.0
    %540 = vmatpush1.msra.mxu0 %v514
    %541 = vmatprep.subr.mxu0 0.0
    %542 = vmatpush1.msra.mxu0 %v515
    %543 = vmatprep.subr.mxu0 0.0
    %544 = vmatpush1.msra.mxu0 %v516
    %545 = vmatprep.subr.mxu0 0.0
    %546 = vmatpush1.msra.mxu0 %v517
    %547 = vmatprep.subr.mxu0 0.0
    %548 = vmatpush1.msra.mxu0 %v518
    %549 = vmatprep.subr.mxu0 0.0
    %550 = vmatpush1.msra.mxu0 %v519
    %551 = vmatprep.subr.mxu0 0.0
    %552 = vmatpush1.msra.mxu0 %v520
    %553 = vmatprep.subr.mxu0 0.0
    %554 = vmatpush1.msra.mxu0 %v521
    %555 = vmatprep.subr.mxu0 0.0
    %556 = vmatpush1.msra.mxu0 %v522
    %557 = vmatprep.subr.mxu0 0.0
    %558 = vmatpush1.msra.mxu0 %v523
    %559 = vmatprep.subr.mxu0 0.0
    %560 = vmatpush1.msra.mxu0 %v524
    %561 = vmatprep.subr.mxu0 0.0
    %562 = vmatpush1.msra.mxu0 %v525
    %563 = vmatprep.subr.mxu0 0.0
    %564 = vmatpush1.msra.mxu0 %v526
    %565 = vmatprep.subr.mxu0 0.0
    %566 = vmatpush1.msra.mxu0 %v527
    %567 = vmatprep.subr.mxu0 0.0
    %568 = vmatpush1.msra.mxu0 0.0
    %569 = vmatprep.subr.mxu0 0.0
    %570 = vmatpush1.msra.mxu0 0.0
    %571 = vmatprep.subr.mxu0 0.0
    %572 = vmatpush1.msra.mxu0 0.0
    %573 = vmatprep.subr.mxu0 0.0
    %574 = vmatpush1.msra.mxu0 0.0
    %575 = vmatprep.subr.mxu0 0.0
    %576 = vmatpush1.msra.mxu0 0.0
    %577 = vmatprep.subr.mxu0 0.0
    %578 = vmatpush1.msra.mxu0 0.0
    %579 = vmatprep.subr.mxu0 0.0
    %580 = vmatpush1.msra.mxu0 0.0
    %581 = vmatprep.subr.mxu0 0.0
    %582 = vmatpush1.msra.mxu0 0.0
    %583 = vmatprep.subr.mxu0 0.0
    %584 = vmatpush1.msra.mxu0 0.0
    %585 = vmatprep.subr.mxu0 0.0
    %586 = vmatpush1.msra.mxu0 0.0
    %587 = vmatprep.subr.mxu0 0.0
    %588 = vmatpush1.msra.mxu0 0.0
    %589 = vmatprep.subr.mxu0 0.0
    %590 = vmatpush1.msra.mxu0 0.0
    %591 = vmatprep.subr.mxu0 0.0
    %592 = vmatpush1.msra.mxu0 0.0
    %593 = vmatprep.subr.mxu0 0.0
    %594 = vmatpush1.msra.mxu0 0.0
    %595 = vmatprep.subr.mxu0 0.0
    %596 = vmatpush1.msra.mxu0 0.0
    %597 = vmatprep.subr.mxu0 0.0
    %598 = vmatpush1.msra.mxu0 0.0
    %599 = vmatprep.mubr.f32.mxu0 0.0
    %600 = vmatmul.mubr.f32.gmra.mrb[0].mxu0 %v504
    %v601 = vpop.f32.mrb[0].mxu0
    %v602 = vadd.f32 %v533, %v601
    %v603 = vpop.f32.mrb[0].mxu0
    %604 = vmatprep.mubr.f32.mxu0 0.0
    %605 = vmatmul.mubr.f32.gmra.mrb[0].mxu0 %v505
    %v606 = vpop.f32.mrb[0].mxu0
    %v607 = vadd.f32 %v533, %v606
    %v608 = vpop.f32.mrb[0].mxu0
    %609 = vmatprep.mubr.f32.mxu0 0.0
    %610 = vmatmul.mubr.f32.gmra.mrb[0].mxu0 %v506
    %v611 = vpop.f32.mrb[0].mxu0
    %v612 = vadd.f32 %v533, %v611
    %v613 = vpop.f32.mrb[0].mxu0
    %614 = vmatprep.mubr.f32.mxu0 0.0
    %615 = vmatmul.mubr.f32.gmra.mrb[0].mxu0 %v507
    %v616 = vpop.f32.mrb[0].mxu0
    %v617 = vadd.f32 %v533, %v616
    %v618 = vpop.f32.mrb[0].mxu0
    %619 = vmatprep.mubr.f32.mxu0 0.0
    %620 = vmatmul.mubr.f32.gmra.mrb[0].mxu0 %v508
    %v621 = vpop.f32.mrb[0].mxu0
    %v622 = vadd.f32 %v533, %v621
    %v623 = vpop.f32.mrb[0].mxu0
    %624 = vmatprep.mubr.f32.mxu0 0.0
    %625 = vmatmul.mubr.f32.gmra.mrb[0].mxu0 %v509
    %v626 = vpop.f32.mrb[0].mxu0
    %v627 = vadd.f32 %v533, %v626
    %v628 = vpop.f32.mrb[0].mxu0
    %629 = vmatprep.mubr.f32.mxu0 0.0
    %630 = vmatmul.mubr.f32.gmra.mrb[0].mxu0 %v510
    %v631 = vpop.f32.mrb[0].mxu0
    %v632 = vadd.f32 %v533, %v631
    %v633 = vpop.f32.mrb[0].mxu0
    %634 = vmatprep.mubr.f32.mxu0 0.0
    %635 = vmatmul.mubr.f32.gmra.mrb[0].mxu0 %v511
    %v636 = vpop.f32.mrb[0].mxu0
    %v637 = vadd.f32 %v533, %v636
    %v638 = vpop.f32.mrb[0].mxu0
    %639 = vdwg.mxu0
    %640 = vst [vmem:[#allocation7] sm:$0xff] %v602
    %641 = vst [vmem:[#allocation7 + $0x8] sm:$0xff] %v607
    %642 = vst [vmem:[#allocation7 + $0x10] sm:$0xff] %v612
    %643 = vst [vmem:[#allocation7 + $0x18] sm:$0xff] %v617
    %644 = vst [vmem:[#allocation7 + $0x20] sm:$0xff] %v622
    %645 = vst [vmem:[#allocation7 + $0x28] sm:$0xff] %v627
    %646 = vst [vmem:[#allocation7 + $0x30] sm:$0xff] %v632
    %647 = vst [vmem:[#allocation7 + $0x38] sm:$0xff] %v637
    // Predicated region
    $region46: #{tpu_custom_call.1} parent=1 // pred_check
      _
    $region47: #{tpu_custom_call.1} parent=1 // pred_check_branch
      %649 = sbr.rel (0) target = $region49
    $region48: #{tpu_custom_call.1} parent=1 // pred_region
      %s651 = ssub.s32 1024, 1024
      %652 = vsyncadd [#allocation4], %s651
      %s653 = sshll.u32 [#allocation7], 4
      %s654 = int_to_ptr.vmem [resolvable:$true] %s653
      %659 = dma.vmem_to_hbm [thread:$0]  %s654, 1024, %s9, [#allocation4], 128, 128, 8
    $region49: #{tpu_custom_call.1} parent=1 // pred_fallthru
      _
    // Predicated region
    $region50: #{tpu_custom_call.1} parent=1 // pred_check
      _
    $region51: #{tpu_custom_call.1} parent=1 // pred_check_branch
      %661 = sbr.rel (0) target = $region53
    $region52: #{tpu_custom_call.1} parent=1 // pred_region
      %662 = dma.done [#allocation4], 1024
    $region53: #{tpu_custom_call.1} parent=1 // pred_fallthru
      _
    %663 = vsyncpa [#allocation3], 1
    %664 = vsyncpa [#allocation6], 1
    %665 = vsyncpa [#allocation4], 1

</llo_original>
